<compile_context>
chip_gen: v6e
topology: v6e:2x2x1
jax: 0.10.0
libtpu: 0.0.40
codegen_flags: <defaults>
</compile_context>

<pallas_src>
import functools
import math

import jax
import jax.numpy as jnp
from jax import lax
from jax.experimental import pallas as pl
from jax.experimental.pallas import tpu as pltpu


def _safe_length_single_kernel(x_ref, o_ref, *, eps, W, C, L):
    """Whole reduction (row length L) in one block; 1-D grid over row blocks."""
    n_full = L // C
    rem = L - n_full * C
    part = None
    for j in range(n_full):                       # static unroll, full lane util
        xc = x_ref[:, j * C:(j + 1) * C].astype(jnp.float32)
        sq = xc * xc
        part = sq if part is None else part + sq
    width = C
    if rem:
        if n_full == 0:
            # Whole row narrower than one chunk (tiny L < C).
            xc = x_ref[:, 0:L].astype(jnp.float32)
            part = xc * xc
            width = L
        else:
            # Overlapping tail chunk [L - C, L); keep only its last `rem` cols
            # (avoids any jnp.pad / oversized block; alignment mod W preserved).
            xc = x_ref[:, L - C:L].astype(jnp.float32)
            col = lax.broadcasted_iota(jnp.int32, xc.shape, 1)
            xc = jnp.where(col >= (C - rem), xc, 0.0)
            part = part + xc * xc
    # Collapse the `width` partial columns down to W (groups aligned mod W).
    tot = part[:, 0:W]
    for w0 in range(W, width, W):
        tot = tot + part[:, w0:w0 + W]
    o_ref[...] = jnp.sqrt(tot + eps).astype(o_ref.dtype)


def _safe_length_multi_kernel(x_ref, o_ref, acc_ref, *, eps, W, C, TC, L, ragged):
    """Reduction tiled along L with an f32 (TR, C) scratch accumulator."""
    c_idx = pl.program_id(1)

    @pl.when(c_idx == 0)
    def _():
        acc_ref[...] = jnp.zeros_like(acc_ref)

    n_chunks = TC // C
    if ragged:
        col = lax.broadcasted_iota(jnp.int32, (x_ref.shape[0], C), 1)
        col_base = c_idx * TC
    part = None
    for j in range(n_chunks):                     # static unroll, full lane util
        xc = x_ref[:, j * C:(j + 1) * C].astype(jnp.float32)
        if ragged:
            xc = jnp.where(col < (L - j * C - col_base), xc, 0.0)
        sq = xc * xc
        part = sq if part is None else part + sq
    acc_ref[...] += part

    @pl.when(c_idx == pl.num_programs(1) - 1)
    def _():
        acc = acc_ref[...]
        tot = acc[:, 0:W]
        for w0 in range(W, C, W):
            tot = tot + acc[:, w0:w0 + W]
        o_ref[...] = jnp.sqrt(tot + eps).astype(o_ref.dtype)


def _vmem_capacity_bytes():
    try:
        info = pltpu.get_tpu_info()
    except Exception:
        return None
    for name in ("vmem_capacity_bytes", "vmem_size_bytes", "vmem_bytes"):
        val = getattr(info, name, None)
        if val:
            return int(val)
    return None


def _sublane_multiple(dtype):
    return {1: 32, 2: 16, 4: 8}.get(jnp.dtype(dtype).itemsize, 8)


_MAX_CHUNKS = 32   # unrolled squared-add chunks per grid step (bounds trace size)


def safe_length(x, dim=2, keepdim=False, eps=1e-7):
    """sqrt(sum(x**2, axis=dim) + eps), matching torch SafeLength semantics."""
    dim = dim % x.ndim

    # Bring the reduced axis to the second-to-last position.  For the default
    # NCHW / dim=2 case this is the identity permutation (no HBM transpose).
    perm = [a for a in range(x.ndim) if a != dim]
    trailing = perm[-1]
    lead = perm[:-1]
    full_perm = lead + [dim, trailing]
    xt = x if full_perm == list(range(x.ndim)) else jnp.transpose(x, full_perm)

    lead_shape = xt.shape[:-2]
    H, W = xt.shape[-2], xt.shape[-1]
    R = 1
    for s in lead_shape:
        R *= s
    L = H * W
    x2 = xt.reshape(R, L)          # contiguous reshape: free, fully lane-dense

    itemsize = jnp.dtype(x.dtype).itemsize
    sub = _sublane_multiple(x.dtype)

    # Chunk width: smallest multiple of W that is also a multiple of 128.
    C = (128 // math.gcd(W, 128)) * W

    # ---- generation-aware block / VMEM budgets ----
    cap = _vmem_capacity_bytes()
    if cap is None:
        gen_budget, vmem_limit = 4 << 20, 32 << 20     # unknown: conservative
    elif cap >= (100 << 20):
        gen_budget, vmem_limit = 8 << 20, 64 << 20     # v5e / v6e (128 MiB VMEM)
    else:
        gen_budget, vmem_limit = 8 << 20, 48 << 20     # v7x-class (64 MiB VMEM)
    # Account for the double-buffered input block plus f32 chunk / accumulator
    # temporaries so narrow dtypes do not blow the VMEM limit.
    block_budget = min(gen_budget,
                       int(0.75 * vmem_limit) * itemsize // (2 * itemsize + 8))
    block_budget = max(block_budget, 1 << 20)

    single = (L <= _MAX_CHUNKS * C
              and min(R, sub) * L * itemsize <= block_budget)

    compiler_params = pltpu.CompilerParams(
        dimension_semantics=("parallel",) if single else ("parallel", "arbitrary"),
        vmem_limit_bytes=vmem_limit,
    )

    if single:
        TC = L
        rows_fit = max(1, block_budget // max(L * itemsize, 1))
        if R <= sub:
            TR = R
        else:
            TR = max(sub, (min(rows_fit, R) // sub) * sub)
            TR = min(TR, ((R - 1) // sub) * sub)   # >= 2 row blocks (megacore)
        grid = (pl.cdiv(R, TR),)
        out2 = pl.pallas_call(
            functools.partial(_safe_length_single_kernel, eps=eps, W=W, C=C, L=L),
            out_shape=jax.ShapeDtypeStruct((R, W), x.dtype),
            grid_spec=pltpu.PrefetchScalarGridSpec(
                num_scalar_prefetch=0,
                grid=grid,
                in_specs=[pl.BlockSpec((TR, TC), lambda r: (r, 0))],
                out_specs=pl.BlockSpec((TR, W), lambda r: (r, 0)),
            ),
            compiler_params=compiler_params,
        )(x2)
    else:
        TC_cap = _MAX_CHUNKS * C
        tr_want = max(1, block_budget // (min(TC_cap, L) * itemsize))
        if R <= sub:
            TR = R
        else:
            TR = max(sub, (min(tr_want, R) // sub) * sub)
            TR = min(TR, ((R - 1) // sub) * sub)   # >= 2 row blocks (megacore)
        tc_budget = min(TC_cap, max(C, block_budget // max(TR * itemsize, 1)))
        if L % C == 0:
            # Largest block width (multiple of C) dividing L: no ragged mask,
            # no padded copy of x.
            m = L // C
            d_max = max(1, min(m, tc_budget // C))
            d = max(dd for dd in range(1, d_max + 1) if m % dd == 0)
            TC = d * C
            ragged = False
        else:
            TC = max(C, (tc_budget // C) * C)
            ragged = True
        grid = (pl.cdiv(R, TR), pl.cdiv(L, TC))
        out2 = pl.pallas_call(
            functools.partial(_safe_length_multi_kernel, eps=eps, W=W, C=C,
                              TC=TC, L=L, ragged=ragged),
            out_shape=jax.ShapeDtypeStruct((R, W), x.dtype),
            grid_spec=pltpu.PrefetchScalarGridSpec(
                num_scalar_prefetch=0,
                grid=grid,
                in_specs=[pl.BlockSpec((TR, TC), lambda r, c: (r, c))],
                out_specs=pl.BlockSpec((TR, W), lambda r, c: (r, 0)),
                scratch_shapes=[pltpu.VMEM((TR, C), jnp.float32)],
            ),
            compiler_params=compiler_params,
        )(x2)

    out = out2.reshape(*lead_shape, W)       # shape of x with `dim` removed
    if keepdim:
        out = jnp.expand_dims(out, dim)
    return out


def safe_length_ref(x, dim=2, keepdim=False, eps=1e-7):
    return jnp.sqrt(jnp.sum(jnp.square(x), axis=dim, keepdims=keepdim) + eps)


if __name__ == "__main__":
    key = jax.random.PRNGKey(0)

    # NCHW input, reduce over dim=2 (H) -> output (B, C, W); exercises the
    # single-L-block fast path with lane-folded W=16.
    x = jax.random.normal(key, (2, 4, 16, 16), dtype=jnp.float32)

    out = jax.block_until_ready(safe_length(x, dim=2, keepdim=False, eps=1e-7))
    ref = safe_length_ref(x, dim=2, keepdim=False, eps=1e-7)
    assert out.shape == ref.shape, (out.shape, ref.shape)
    assert jnp.allclose(out, ref, atol=1e-5, rtol=1e-5), "mismatch vs reference"

    # keepdim=True path.
    out_kd = jax.block_until_ready(safe_length(x, dim=2, keepdim=True))
    ref_kd = safe_length_ref(x, dim=2, keepdim=True)
    assert out_kd.shape == ref_kd.shape, (out_kd.shape, ref_kd.shape)
    assert jnp.allclose(out_kd, ref_kd, atol=1e-5, rtol=1e-5), "keepdim mismatch"

    # Larger reduction length exercises the tiled (scratch accumulator) path.
    x2 = jax.random.normal(jax.random.PRNGKey(1), (1, 2, 40, 128),
                           dtype=jnp.float32)
    out2 = jax.block_until_ready(safe_length(x2, dim=2))
    ref2 = safe_length_ref(x2, dim=2)
    assert out2.shape == ref2.shape, (out2.shape, ref2.shape)
    assert jnp.allclose(out2, ref2, atol=1e-5, rtol=1e-5), "multi-block mismatch"

    print("KERNEL_OK")
</pallas_src>

<mosaic_0001>
module attributes {stable_mosaic.version = 11 : i64} {
  func.func @_safe_length_single_kernel(%arg0: i32, %arg1: memref<8x256xf32, #tpu.memory_space<vmem>>, %arg2: memref<8x16xf32, #tpu.memory_space<vmem>>) attributes {dimension_semantics = [#tpu.dimension_semantics<parallel>], iteration_bounds = array<i64: 1>, scalar_prefetch = 0 : i64, scratch_operands = 0 : i64, tpu.core_type = #tpu.core_type<tc>, window_params = [{transform_indices = @transform_0, window_bounds = array<i64: 8, 256>}, {transform_indices = @transform_1, window_bounds = array<i64: 8, 16>}]} {
    %c0 = arith.constant 0 : index
    %c0_0 = arith.constant 0 : index
    %0 = vector.load %arg1[%c0, %c0_0] : memref<8x256xf32, #tpu.memory_space<vmem>>, vector<8x128xf32>
    %1 = arith.mulf %0, %0 : vector<8x128xf32>
    %c0_1 = arith.constant 0 : index
    %c128 = arith.constant 128 : index
    %2 = vector.load %arg1[%c0_1, %c128] : memref<8x256xf32, #tpu.memory_space<vmem>>, vector<8x128xf32>
    %3 = arith.mulf %2, %2 : vector<8x128xf32>
    %4 = arith.addf %1, %3 : vector<8x128xf32>
    %5 = vector.extract_strided_slice %4 {offsets = [0, 0], sizes = [8, 16], strides = [1, 1]} : vector<8x128xf32> to vector<8x16xf32>
    %6 = vector.extract_strided_slice %4 {offsets = [0, 16], sizes = [8, 16], strides = [1, 1]} : vector<8x128xf32> to vector<8x16xf32>
    %7 = arith.addf %5, %6 : vector<8x16xf32>
    %8 = vector.extract_strided_slice %4 {offsets = [0, 32], sizes = [8, 16], strides = [1, 1]} : vector<8x128xf32> to vector<8x16xf32>
    %9 = arith.addf %7, %8 : vector<8x16xf32>
    %10 = vector.extract_strided_slice %4 {offsets = [0, 48], sizes = [8, 16], strides = [1, 1]} : vector<8x128xf32> to vector<8x16xf32>
    %11 = arith.addf %9, %10 : vector<8x16xf32>
    %12 = vector.extract_strided_slice %4 {offsets = [0, 64], sizes = [8, 16], strides = [1, 1]} : vector<8x128xf32> to vector<8x16xf32>
    %13 = arith.addf %11, %12 : vector<8x16xf32>
    %14 = vector.extract_strided_slice %4 {offsets = [0, 80], sizes = [8, 16], strides = [1, 1]} : vector<8x128xf32> to vector<8x16xf32>
    %15 = arith.addf %13, %14 : vector<8x16xf32>
    %16 = vector.extract_strided_slice %4 {offsets = [0, 96], sizes = [8, 16], strides = [1, 1]} : vector<8x128xf32> to vector<8x16xf32>
    %17 = arith.addf %15, %16 : vector<8x16xf32>
    %18 = vector.extract_strided_slice %4 {offsets = [0, 112], sizes = [8, 16], strides = [1, 1]} : vector<8x128xf32> to vector<8x16xf32>
    %19 = arith.addf %17, %18 : vector<8x16xf32>
    %cst = arith.constant 1.000000e-07 : f32
    %20 = vector.broadcast %cst : f32 to vector<8x16xf32>
    %21 = arith.addf %19, %20 : vector<8x16xf32>
    %22 = math.sqrt %21 : vector<8x16xf32>
    %c0_2 = arith.constant 0 : index
    %c0_3 = arith.constant 0 : index
    %23 = vector.load %arg2[%c0_2, %c0_3] : memref<8x16xf32, #tpu.memory_space<vmem>>, vector<8x16xf32>
    tpu.vector_store %arg2[%c0_2, %c0_3], %22 {strides = array<i32>} : memref<8x16xf32, #tpu.memory_space<vmem>>, vector<8x16xf32>,
    return
  }
  func.func @transform_0(%arg0: i32) -> (i32, i32) {
    %c0_i32 = arith.constant 0 : i32
    %c0_i32_0 = arith.constant 0 : i32
    return %arg0, %c0_i32 : i32, i32
  }
  func.func @transform_1(%arg0: i32) -> (i32, i32) {
    %c0_i32 = arith.constant 0 : i32
    %c0_i32_0 = arith.constant 0 : i32
    return %arg0, %c0_i32 : i32, i32
  }
}

</mosaic_0001>

<llo_original>
// kernel: tpu_custom_call.1
$region0: #{tpu_custom_call.1}
  #allocation0 [shape = 'u32[]', space=smem, size = 0x4, offset = 0x4, fixed_abs, tag = 'smem constant byte address 0x4 - core index']
  #allocation1 [shape = 'u32[144,128]{1,0:T(1,128)}', space=vmem, size = 0x12000, scoped, tag = 'internal scratch']
  %s0 = inlined_call_operand.hbm [shape: f32[8,256], index: 0, kind: input, shape index: {}]
  %s1 = inlined_call_operand.hbm [shape: f32[8,16], index: 1, kind: output, shape index: {}]
  %s2 = sld [smem:[#allocation0]]
  $region18: #{tpu_custom_call.1} parent=0
    _
  %s4 = ssub.s32 1, %s2
  %s5 = scalar_select 0, %s4, %s2
  $region1: #{tpu_custom_call.1} parent=0
    #allocation2 [shape = 'u8[8192]{0}', space=vmem, size = 0x2000, scoped, tag = 'input window, operand 0, single buffered']
    #allocation3 [shape = 's32[1]{0}', space=sflag, size = 0x4, scoped, tag = 'scoped memory for tpu_custom_call.1']
    #allocation4 [shape = 's32[1]{0}', space=sflag, size = 0x4, scoped, tag = 'scoped memory for tpu_custom_call.1']
    #allocation5 [shape = 'u8[4096]{0}', space=vmem, size = 0x1000, scoped, tag = 'output window, operand 0, single buffered']
    %6 = vsyncpa [#allocation3], 0
    %7 = vsyncpa [#allocation4], 0
    // Predicated region
    $region2: #{tpu_custom_call.1} parent=1 // pred_check
      _
    $region3: #{tpu_custom_call.1} parent=1 // pred_check_branch
      %9 = sbr.rel (0) target = $region5
    $region4: #{tpu_custom_call.1} parent=1 // pred_region
      %s11 = ssub.s32 256, 256
      %12 = vsyncadd [#allocation3], %s11
      %s14 = sshll.u32 [#allocation2], 4
      %s15 = int_to_ptr.vmem [resolvable:$true] %s14
      %17 = dma.hbm_to_vmem [thread:$0]  %s0, 256, %s15, [#allocation3]
    $region5: #{tpu_custom_call.1} parent=1 // pred_fallthru
      _
    // Predicated region
    $region6: #{tpu_custom_call.1} parent=1 // pred_check
      _
    $region7: #{tpu_custom_call.1} parent=1 // pred_check_branch
      %19 = sbr.rel (0) target = $region9
    $region8: #{tpu_custom_call.1} parent=1 // pred_region
      %20 = dma.done [#allocation3], 256
    $region9: #{tpu_custom_call.1} parent=1 // pred_fallthru
      _
    %v21 = vld [vmem:[#allocation2] sm:$0xff]
    %v22 = vmul.f32 %v21, %v21
    %v23 = vld [vmem:[#allocation2 + $0x8] sm:$0xff]
    %v24 = vmul.f32 %v23, %v23
    %v25 = vadd.f32 %v22, %v24
    %27 = vrot.lane.b32.xlu0 %v25, 112
    %v28 = vpop.permute.xlu0 %27
    %v30 = vadd.f32 %v25, %v28
    %31 = vrot.lane.b32.xlu0 %v25, 96
    %v32 = vpop.permute.xlu0 %31
    %v34 = vadd.f32 %v30, %v32
    %35 = vrot.lane.b32.xlu0 %v25, 80
    %v36 = vpop.permute.xlu0 %35
    %v38 = vadd.f32 %v34, %v36
    %39 = vrot.lane.b32.xlu0 %v25, 64
    %v40 = vpop.permute.xlu0 %39
    %v42 = vadd.f32 %v38, %v40
    %43 = vrot.lane.b32.xlu0 %v25, 48
    %v44 = vpop.permute.xlu0 %43
    %v46 = vadd.f32 %v42, %v44
    %47 = vrot.lane.b32.xlu0 %v25, 32
    %v48 = vpop.permute.xlu0 %47
    %v50 = vadd.f32 %v46, %v48
    %51 = vrot.lane.b32.xlu0 %v25, 16
    %v52 = vpop.permute.xlu0 %51
    %v54 = vadd.f32 %v50, %v52
    %v55 = vadd.f32 %v54, 1e-07
    %v56 = vrsqrt.pop %v55
    %v57 = vmul.f32 %v55, %v56
    %vm58 = vcmp.eq.f32.partialorder %v55, inf
    %v59 = vsel %vm58, %v55, %v57
    %vm60 = vcmp.eq.f32.partialorder %v55, 0.0
    %v61 = vand.u32 %v55, 2147483648
    %v62 = vsel %vm60, %v61, %v59
    %vm63 = vcmask 130048
    %64 = vst.msk [vmem:[#allocation5] sm:$0xff] %vm63, %v62
    // Predicated region
    $region10: #{tpu_custom_call.1} parent=1 // pred_check
      _
    $region11: #{tpu_custom_call.1} parent=1 // pred_check_branch
      %66 = sbr.rel (0) target = $region13
    $region12: #{tpu_custom_call.1} parent=1 // pred_region
      %s68 = ssub.s32 128, 128
      %69 = vsyncadd [#allocation4], %s68
      %s71 = sshll.u32 [#allocation5], 4
      %s72 = int_to_ptr.vmem [resolvable:$true] %s71
      %74 = dma.vmem_to_hbm [thread:$0]  %s72, 128, %s1, [#allocation4]
    $region13: #{tpu_custom_call.1} parent=1 // pred_fallthru
      _
    // Predicated region
    $region14: #{tpu_custom_call.1} parent=1 // pred_check
      _
    $region15: #{tpu_custom_call.1} parent=1 // pred_check_branch
      %76 = sbr.rel (0) target = $region17
    $region16: #{tpu_custom_call.1} parent=1 // pred_region
      %77 = dma.done [#allocation4], 128
    $region17: #{tpu_custom_call.1} parent=1 // pred_fallthru
      _
    %78 = vsyncpa [#allocation3], 1
    %79 = vsyncpa [#allocation4], 1

</llo_original>
